<compile_context>
chip_gen: v7x
topology: tpu7x:2x2x1
jax: 0.10.0
libtpu: 0.0.40
codegen_flags: <defaults>
</compile_context>

<pallas_src>
import functools

import numpy as np
import jax
import jax.numpy as jnp
from jax import lax
from jax.experimental import pallas as pl
from jax.experimental.pallas import tpu as pltpu

LANE = 128


def _round_up(x, m):
    return (x + m - 1) // m * m


def _pad2(x, rows, cols):
    r, c = x.shape
    return jnp.pad(x, ((0, rows - r), (0, cols - c)))


# ------------------------- Fused Pallas kernel -------------------------

def _nar_fused_kernel(node_ref, edge_ref,
                      w_ne_ref, w_ee_ref, w_np_ref, w_ep_ref,
                      dw1_ref, db1_ref, dw2_ref, db2_ref,
                      o_ref, *, steps, node_states, edge_states):
    """Whole NarModel eval forward:
         repeat `steps` times:
           encoder (Linear, no bias) -> processor -> projection (Linear, no bias,
           1/tau pre-folded) -> gumbel_softmax (eval path: no noise == softmax)
         then decoder = Linear(states, h) -> Linear(h, 1), written lane-dense.
       All tensors arrive zero-padded to 128 lanes; padded logit lanes are masked
       to -inf before the softmax so padded lanes stay exactly zero.
    """
    lane = lax.broadcasted_iota(jnp.int32, (1, LANE), 1)
    node_mask = lane < node_states
    edge_mask = lane < edge_states

    # Loop-invariant weights: load once, reuse across iterations.
    w_ne = w_ne_ref[...]
    w_ee = w_ee_ref[...]
    w_np = w_np_ref[...]
    w_ep = w_ep_ref[...]

    def masked_softmax(logits, mask):
        z = jnp.where(mask, logits, -1e30)
        m = jnp.max(z, axis=-1, keepdims=True)
        e = jnp.exp(z - m)
        s = jnp.sum(e, axis=-1, keepdims=True)
        return e * pl.reciprocal(s, approx=True)

    def step(_, carry):
        nf, ef = carry
        nh = jnp.dot(nf, w_ne, preferred_element_type=jnp.float32)
        eh = jnp.dot(ef, w_ee, preferred_element_type=jnp.float32)
        # TODO(synk): Transformer processor body is not provided by the reference
        # module; treated as an identity pass-through on the encoded features.
        nl = jnp.dot(nh, w_np, preferred_element_type=jnp.float32)  # 1/tau folded in
        el = jnp.dot(eh, w_ep, preferred_element_type=jnp.float32)
        return masked_softmax(nl, node_mask), masked_softmax(el, edge_mask)

    nf, ef = lax.fori_loop(0, steps, step, (node_ref[...], edge_ref[...]),
                           unroll=True)
    del ef  # output_location == 'node'

    # Decoder: Linear(states, h) + bias -> Linear(h, 1) + bias, lane-dense slab.
    h1 = jnp.dot(nf, dw1_ref[...], preferred_element_type=jnp.float32) + db1_ref[...]
    out = jnp.dot(h1, dw2_ref[...], preferred_element_type=jnp.float32) + db2_ref[...]
    o_ref[...] = out  # (N_pad, 128); column 0 carries the prediction


_VMEM_SPEC = pl.BlockSpec(memory_space=pltpu.MemorySpace.VMEM)


@functools.partial(jax.jit, static_argnames=("steps",))
def nar_forward(node_fts, edge_fts,
                w_node_enc, w_edge_enc, w_node_proj, w_edge_proj,
                dec_w1, dec_b1, dec_w2, dec_b2, tau, *, steps):
    n, node_states = node_fts.shape
    e, edge_states = edge_fts.shape
    n_pad = _round_up(n, 8)
    e_pad = _round_up(e, 8)
    c_pad = LANE

    inv_tau = 1.0 / tau  # fold temperature into projection weights (eval constant)

    node_p = _pad2(node_fts.astype(jnp.float32), n_pad, c_pad)
    edge_p = _pad2(edge_fts.astype(jnp.float32), e_pad, c_pad)
    w_ne_p = _pad2(w_node_enc, c_pad, c_pad)
    w_ee_p = _pad2(w_edge_enc, c_pad, c_pad)
    w_np_p = _pad2(w_node_proj * inv_tau, c_pad, c_pad)
    w_ep_p = _pad2(w_edge_proj * inv_tau, c_pad, c_pad)
    dw1_p = _pad2(dec_w1, c_pad, c_pad)
    db1_p = _pad2(dec_b1, 1, c_pad)
    dw2_p = _pad2(dec_w2, c_pad, c_pad)
    db2_p = _pad2(dec_b2, 1, c_pad)

    kernel = functools.partial(_nar_fused_kernel, steps=steps,
                               node_states=node_states, edge_states=edge_states)
    out = pl.pallas_call(
        kernel,
        in_specs=[_VMEM_SPEC] * 10,
        out_specs=_VMEM_SPEC,
        out_shape=jax.ShapeDtypeStruct((n_pad, LANE), jnp.float32),
    )(node_p, edge_p, w_ne_p, w_ee_p, w_np_p, w_ep_p,
      dw1_p, db1_p, dw2_p, db2_p)
    return out[:n, 0]  # lane-dense slab -> (N,) predictions (reference .squeeze())


# ------------------------- Model glue -------------------------

class NarModelPallas:
    """Eval-mode NarModel: use_discrete_bottleneck=True, output_location='node',
       scalars_update=None, stepwise_training=False, hints=None."""

    def __init__(self, key, h=32, node_states_count=4, edge_states_count=6,
                 steps_mul=0.25, temp_on_eval=1.0):
        self.h = h
        self.node_states_count = node_states_count
        self.edge_states_count = edge_states_count
        self.steps_mul = steps_mul
        self.temp_on_eval = temp_on_eval
        ks = jax.random.split(key, 6)
        # weights stored [in_features, out_features]
        self.w_node_enc = jax.random.normal(ks[0], (node_states_count, h), jnp.float32) / jnp.sqrt(node_states_count)
        self.w_edge_enc = jax.random.normal(ks[1], (edge_states_count, h), jnp.float32) / jnp.sqrt(edge_states_count)
        self.w_node_proj = jax.random.normal(ks[2], (h, node_states_count), jnp.float32) / jnp.sqrt(h)
        self.w_edge_proj = jax.random.normal(ks[3], (h, edge_states_count), jnp.float32) / jnp.sqrt(h)
        # decoder = Linear(node_states_count, h) -> Linear(h, 1), both with bias
        self.dec_w1 = jax.random.normal(ks[4], (node_states_count, h), jnp.float32) / jnp.sqrt(node_states_count)
        self.dec_b1 = jnp.zeros((1, h), jnp.float32)
        self.dec_w2 = jax.random.normal(ks[5], (h, 1), jnp.float32) / jnp.sqrt(h)
        self.dec_b2 = jnp.zeros((1, 1), jnp.float32)

    def steps_counter(self, num_nodes):
        return int(num_nodes * self.steps_mul)

    def forward(self, node_fts, edge_fts, edge_index, reverse_idx, scalars, batch,
                training_step=-1, nodes_in_first_graph=None):
        # Static step count on the host (avoids a device->host sync per forward).
        if nodes_in_first_graph is None:
            nodes_in_first_graph = int(np.asarray(batch == 0).sum())
        steps = self.steps_counter(nodes_in_first_graph)
        # TODO(synk): batch_reverse_index and the per-step eval scalar normalization
        # (scalars / scalars.max()) are only consumed by the stubbed Transformer
        # processor; they are dropped here as dead work per the performance review.
        return nar_forward(node_fts, edge_fts,
                           self.w_node_enc, self.w_edge_enc,
                           self.w_node_proj, self.w_edge_proj,
                           self.dec_w1, self.dec_b1, self.dec_w2, self.dec_b2,
                           jnp.float32(self.temp_on_eval), steps=steps)


# ------------------------- Driver -------------------------

if __name__ == "__main__":
    key = jax.random.PRNGKey(0)
    k_model, k_node, k_edge, k_scal = jax.random.split(key, 4)

    N, E = 16, 32                # 2 graphs x 8 nodes, 16 edges per graph
    NODE_STATES, EDGE_STATES, H = 4, 6, 32

    model = NarModelPallas(k_model, h=H, node_states_count=NODE_STATES,
                           edge_states_count=EDGE_STATES, steps_mul=0.25,
                           temp_on_eval=1.0)

    # One-hot initial node / edge state features.
    node_states = jax.random.randint(k_node, (N,), 0, NODE_STATES)
    edge_states = jax.random.randint(k_edge, (E,), 0, EDGE_STATES)
    node_fts = jax.nn.one_hot(node_states, NODE_STATES, dtype=jnp.float32)     # (16, 4)
    edge_fts = jax.nn.one_hot(edge_states, EDGE_STATES, dtype=jnp.float32)     # (32, 6)

    # Graph structure: 2 graphs of 8 nodes; edges form reciprocal pairs within a graph.
    batch = jnp.concatenate([jnp.zeros(8, jnp.int32), jnp.ones(8, jnp.int32)])  # (16,)
    src, dst, rev = [], [], []
    for g in range(2):
        base = g * 8
        for i in range(8):
            j = (i + 1) % 8
            src += [base + i, base + j]
            dst += [base + j, base + i]
            rev += [2 * i + 1, 2 * i]     # local reverse index within the graph
    edge_index = jnp.array([src, dst], dtype=jnp.int32)                         # (2, 32)
    reverse_idx = jnp.array(rev, dtype=jnp.int32)                               # (32,)

    scalars = jax.random.uniform(k_scal, (E,), jnp.float32, 0.1, 1.0)           # (32,)

    preds = model.forward(node_fts, edge_fts, edge_index, reverse_idx, scalars, batch,
                          training_step=-1, nodes_in_first_graph=8)
    jax.block_until_ready(preds)
    assert preds.shape == (N,)
    assert bool(jnp.all(jnp.isfinite(preds)))
    print("KERNEL_OK")
</pallas_src>

<mosaic_0001>
module attributes {stable_mosaic.version = 11 : i64} {
  func.func @_nar_fused_kernel(%arg0: memref<16x128xf32, #tpu.memory_space<vmem>>, %arg1: memref<32x128xf32, #tpu.memory_space<vmem>>, %arg2: memref<128x128xf32, #tpu.memory_space<vmem>>, %arg3: memref<128x128xf32, #tpu.memory_space<vmem>>, %arg4: memref<128x128xf32, #tpu.memory_space<vmem>>, %arg5: memref<128x128xf32, #tpu.memory_space<vmem>>, %arg6: memref<128x128xf32, #tpu.memory_space<vmem>>, %arg7: memref<1x128xf32, #tpu.memory_space<vmem>>, %arg8: memref<128x128xf32, #tpu.memory_space<vmem>>, %arg9: memref<1x128xf32, #tpu.memory_space<vmem>>, %arg10: memref<16x128xf32, #tpu.memory_space<vmem>>) attributes {dimension_semantics = [], scalar_prefetch = 0 : i64, scratch_operands = 0 : i64, tpu.core_type = #tpu.core_type<tc>} {
    %0 = tpu.iota {dimensions = array<i32: 1>} : vector<1x128xi32>
    %c4_i32 = arith.constant 4 : i32
    %1 = vector.broadcast %c4_i32 : i32 to vector<1x128xi32>
    %2 = arith.cmpi slt, %0, %1 : vector<1x128xi32>
    %c0 = arith.constant 0 : index
    %c0_0 = arith.constant 0 : index
    %3 = vector.load %arg2[%c0, %c0_0] : memref<128x128xf32, #tpu.memory_space<vmem>>, vector<128x128xf32>
    %c0_1 = arith.constant 0 : index
    %c0_2 = arith.constant 0 : index
    %4 = vector.load %arg4[%c0_1, %c0_2] : memref<128x128xf32, #tpu.memory_space<vmem>>, vector<128x128xf32>
    %c0_3 = arith.constant 0 : index
    %c0_4 = arith.constant 0 : index
    %5 = vector.load %arg0[%c0_3, %c0_4] : memref<16x128xf32, #tpu.memory_space<vmem>>, vector<16x128xf32>
    %c0_i32 = arith.constant 0 : i32
    %cst = arith.constant dense<0.000000e+00> : vector<16x128xf32>
    %6 = tpu.matmul %5, %3, %cst {dimension_numbers = #tpu.dot_dimension_numbers<[1], [0], [0], [1], [0, 0, 1, 1], [], []>} : vector<16x128xf32>, vector<128x128xf32>, vector<16x128xf32> -> vector<16x128xf32>
    %cst_5 = arith.constant dense<0.000000e+00> : vector<16x128xf32>
    %7 = tpu.matmul %6, %4, %cst_5 {dimension_numbers = #tpu.dot_dimension_numbers<[1], [0], [0], [1], [0, 0, 1, 1], [], []>} : vector<16x128xf32>, vector<128x128xf32>, vector<16x128xf32> -> vector<16x128xf32>
    %cst_6 = arith.constant -1.000000e+30 : f32
    %8 = vector.shape_cast %2 : vector<1x128xi1> to vector<1x128xi1>
    %9 = vector.broadcast %8 : vector<1x128xi1> to vector<16x128xi1>
    %10 = vector.broadcast %cst_6 : f32 to vector<16x128xf32>
    %11 = arith.select %9, %7, %10 : vector<16x128xi1>, vector<16x128xf32>
    %cst_7 = arith.constant dense<0xFF800000> : vector<16xf32>
    %12 = vector.multi_reduction <maximumf>, %11, %cst_7 [1] : vector<16x128xf32> to vector<16xf32>
    %13 = vector.shape_cast %12 : vector<16xf32> to vector<16x1xf32>
    %14 = vector.broadcast %13 : vector<16x1xf32> to vector<16x128xf32>
    %15 = arith.subf %11, %14 : vector<16x128xf32>
    %16 = math.exp %15 : vector<16x128xf32>
    %cst_8 = arith.constant dense<0.000000e+00> : vector<16xf32>
    %17 = vector.multi_reduction <add>, %16, %cst_8 [1] : vector<16x128xf32> to vector<16xf32>
    %18 = vector.shape_cast %17 : vector<16xf32> to vector<16x1xf32>
    %19 = tpu.reciprocal %18 {approx = true} : vector<16x1xf32> -> vector<16x1xf32>
    %20 = vector.broadcast %19 : vector<16x1xf32> to vector<16x128xf32>
    %21 = arith.mulf %16, %20 : vector<16x128xf32>
    %c1_i32 = arith.constant 1 : i32
    %cst_9 = arith.constant dense<0.000000e+00> : vector<16x128xf32>
    %22 = tpu.matmul %21, %3, %cst_9 {dimension_numbers = #tpu.dot_dimension_numbers<[1], [0], [0], [1], [0, 0, 1, 1], [], []>} : vector<16x128xf32>, vector<128x128xf32>, vector<16x128xf32> -> vector<16x128xf32>
    %cst_10 = arith.constant dense<0.000000e+00> : vector<16x128xf32>
    %23 = tpu.matmul %22, %4, %cst_10 {dimension_numbers = #tpu.dot_dimension_numbers<[1], [0], [0], [1], [0, 0, 1, 1], [], []>} : vector<16x128xf32>, vector<128x128xf32>, vector<16x128xf32> -> vector<16x128xf32>
    %cst_11 = arith.constant -1.000000e+30 : f32
    %24 = vector.shape_cast %2 : vector<1x128xi1> to vector<1x128xi1>
    %25 = vector.broadcast %24 : vector<1x128xi1> to vector<16x128xi1>
    %26 = vector.broadcast %cst_11 : f32 to vector<16x128xf32>
    %27 = arith.select %25, %23, %26 : vector<16x128xi1>, vector<16x128xf32>
    %cst_12 = arith.constant dense<0xFF800000> : vector<16xf32>
    %28 = vector.multi_reduction <maximumf>, %27, %cst_12 [1] : vector<16x128xf32> to vector<16xf32>
    %29 = vector.shape_cast %28 : vector<16xf32> to vector<16x1xf32>
    %30 = vector.broadcast %29 : vector<16x1xf32> to vector<16x128xf32>
    %31 = arith.subf %27, %30 : vector<16x128xf32>
    %32 = math.exp %31 : vector<16x128xf32>
    %cst_13 = arith.constant dense<0.000000e+00> : vector<16xf32>
    %33 = vector.multi_reduction <add>, %32, %cst_13 [1] : vector<16x128xf32> to vector<16xf32>
    %34 = vector.shape_cast %33 : vector<16xf32> to vector<16x1xf32>
    %35 = tpu.reciprocal %34 {approx = true} : vector<16x1xf32> -> vector<16x1xf32>
    %36 = vector.broadcast %35 : vector<16x1xf32> to vector<16x128xf32>
    %37 = arith.mulf %32, %36 : vector<16x128xf32>
    %c0_14 = arith.constant 0 : index
    %c0_15 = arith.constant 0 : index
    %38 = vector.load %arg6[%c0_14, %c0_15] : memref<128x128xf32, #tpu.memory_space<vmem>>, vector<128x128xf32>
    %cst_16 = arith.constant dense<0.000000e+00> : vector<16x128xf32>
    %39 = tpu.matmul %37, %38, %cst_16 {dimension_numbers = #tpu.dot_dimension_numbers<[1], [0], [0], [1], [0, 0, 1, 1], [], []>} : vector<16x128xf32>, vector<128x128xf32>, vector<16x128xf32> -> vector<16x128xf32>
    %c0_17 = arith.constant 0 : index
    %c0_18 = arith.constant 0 : index
    %40 = vector.load %arg7[%c0_17, %c0_18] : memref<1x128xf32, #tpu.memory_space<vmem>>, vector<1x128xf32>
    %41 = vector.broadcast %40 : vector<1x128xf32> to vector<16x128xf32>
    %42 = arith.addf %39, %41 : vector<16x128xf32>
    %c0_19 = arith.constant 0 : index
    %c0_20 = arith.constant 0 : index
    %43 = vector.load %arg8[%c0_19, %c0_20] : memref<128x128xf32, #tpu.memory_space<vmem>>, vector<128x128xf32>
    %cst_21 = arith.constant dense<0.000000e+00> : vector<16x128xf32>
    %44 = tpu.matmul %42, %43, %cst_21 {dimension_numbers = #tpu.dot_dimension_numbers<[1], [0], [0], [1], [0, 0, 1, 1], [], []>} : vector<16x128xf32>, vector<128x128xf32>, vector<16x128xf32> -> vector<16x128xf32>
    %c0_22 = arith.constant 0 : index
    %c0_23 = arith.constant 0 : index
    %45 = vector.load %arg9[%c0_22, %c0_23] : memref<1x128xf32, #tpu.memory_space<vmem>>, vector<1x128xf32>
    %46 = vector.broadcast %45 : vector<1x128xf32> to vector<16x128xf32>
    %47 = arith.addf %44, %46 : vector<16x128xf32>
    %c0_24 = arith.constant 0 : index
    %c0_25 = arith.constant 0 : index
    %48 = vector.load %arg10[%c0_24, %c0_25] : memref<16x128xf32, #tpu.memory_space<vmem>>, vector<16x128xf32>
    tpu.vector_store %arg10[%c0_24, %c0_25], %47 {strides = array<i32>} : memref<16x128xf32, #tpu.memory_space<vmem>>, vector<16x128xf32>,
    return
  }
}

</mosaic_0001>

<llo_original>
// kernel: nar_forward.1
$region0: #{nar_forward.1}
  #allocation0 [shape = 'u32[]', space=smem, size = 0x4, offset = 0x4, fixed_abs, tag = 'smem constant byte address 0x4 - core index']
  #allocation1 [shape = 'u32[144,128]{1,0:T(1,128)}', space=vmem, size = 0x12000, scoped, tag = 'internal scratch']
  %s0 = inlined_call_operand.vmem [shape: f32[16,128], index: 0, kind: input, shape index: {}]
  %s1 = inlined_call_operand.vmem [shape: f32[32,128], index: 1, kind: input, shape index: {}]
  %s2 = inlined_call_operand.vmem [shape: f32[128,128], index: 2, kind: input, shape index: {}]
  %s3 = inlined_call_operand.vmem [shape: f32[128,128], index: 3, kind: input, shape index: {}]
  %s4 = inlined_call_operand.vmem [shape: f32[128,128], index: 4, kind: input, shape index: {}]
  %s5 = inlined_call_operand.vmem [shape: f32[128,128], index: 5, kind: input, shape index: {}]
  %s6 = inlined_call_operand.vmem [shape: f32[128,128], index: 6, kind: input, shape index: {}]
  %s7 = inlined_call_operand.vmem [shape: f32[1,128], index: 7, kind: input, shape index: {}]
  %s8 = inlined_call_operand.vmem [shape: f32[128,128], index: 8, kind: input, shape index: {}]
  %s9 = inlined_call_operand.vmem [shape: f32[1,128], index: 9, kind: input, shape index: {}]
  %s10 = inlined_call_operand.vmem [shape: f32[16,128], index: 10, kind: output, shape index: {}]
  %s11 = sld [smem:[#allocation0]]
  $region50: #{nar_forward.1} parent=0
    _
  %s13 = ssub.s32 1, %s11
  %s14 = scalar_select 0, %s13, %s11
  // Predicated region
  $region2: #{nar_forward.1} parent=0 // pred_check
    _
  $region3: #{nar_forward.1} parent=0 // pred_check_branch
    %16 = sbr.rel (0) target = $region5
  $region4: #{nar_forward.1} parent=0 // pred_region
    _
  $region5: #{nar_forward.1} parent=0 // pred_fallthru
    _
  // Predicated region
  $region6: #{nar_forward.1} parent=0 // pred_check
    _
  $region7: #{nar_forward.1} parent=0 // pred_check_branch
    %18 = sbr.rel (0) target = $region9
  $region8: #{nar_forward.1} parent=0 // pred_region
    _
  $region9: #{nar_forward.1} parent=0 // pred_fallthru
    _
  // Predicated region
  $region10: #{nar_forward.1} parent=0 // pred_check
    _
  $region11: #{nar_forward.1} parent=0 // pred_check_branch
    %20 = sbr.rel (0) target = $region13
  $region12: #{nar_forward.1} parent=0 // pred_region
    _
  $region13: #{nar_forward.1} parent=0 // pred_fallthru
    _
  // Predicated region
  $region14: #{nar_forward.1} parent=0 // pred_check
    _
  $region15: #{nar_forward.1} parent=0 // pred_check_branch
    %22 = sbr.rel (0) target = $region17
  $region16: #{nar_forward.1} parent=0 // pred_region
    _
  $region17: #{nar_forward.1} parent=0 // pred_fallthru
    _
  // Predicated region
  $region18: #{nar_forward.1} parent=0 // pred_check
    _
  $region19: #{nar_forward.1} parent=0 // pred_check_branch
    %24 = sbr.rel (0) target = $region21
  $region20: #{nar_forward.1} parent=0 // pred_region
    _
  $region21: #{nar_forward.1} parent=0 // pred_fallthru
    _
  // Predicated region
  $region22: #{nar_forward.1} parent=0 // pred_check
    _
  $region23: #{nar_forward.1} parent=0 // pred_check_branch
    %26 = sbr.rel (0) target = $region25
  $region24: #{nar_forward.1} parent=0 // pred_region
    _
  $region25: #{nar_forward.1} parent=0 // pred_fallthru
    _
  // Predicated region
  $region26: #{nar_forward.1} parent=0 // pred_check
    _
  $region27: #{nar_forward.1} parent=0 // pred_check_branch
    %28 = sbr.rel (0) target = $region29
  $region28: #{nar_forward.1} parent=0 // pred_region
    _
  $region29: #{nar_forward.1} parent=0 // pred_fallthru
    _
  // Predicated region
  $region30: #{nar_forward.1} parent=0 // pred_check
    _
  $region31: #{nar_forward.1} parent=0 // pred_check_branch
    %30 = sbr.rel (0) target = $region33
  $region32: #{nar_forward.1} parent=0 // pred_region
    _
  $region33: #{nar_forward.1} parent=0 // pred_fallthru
    _
  // Predicated region
  $region34: #{nar_forward.1} parent=0 // pred_check
    _
  $region35: #{nar_forward.1} parent=0 // pred_check_branch
    %32 = sbr.rel (0) target = $region37
  $region36: #{nar_forward.1} parent=0 // pred_region
    _
  $region37: #{nar_forward.1} parent=0 // pred_fallthru
    _
  // Predicated region
  $region38: #{nar_forward.1} parent=0 // pred_check
    _
  $region39: #{nar_forward.1} parent=0 // pred_check_branch
    %34 = sbr.rel (0) target = $region41
  $region40: #{nar_forward.1} parent=0 // pred_region
    _
  $region41: #{nar_forward.1} parent=0 // pred_fallthru
    _
  %v35 = vlaneseq
  %v36 = vand.u32 %v35, 127
  %vm37 = vcmp.lt.s32.totalorder %v36, 4
  %v38 = vld [vmem:[%s2] sm:$0xff]
  %v39 = vld [vmem:[%s2 + $0x8] sm:$0xff]
  %v40 = vld [vmem:[%s2 + $0x10] sm:$0xff]
  %v41 = vld [vmem:[%s2 + $0x18] sm:$0xff]
  %v42 = vld [vmem:[%s2 + $0x20] sm:$0xff]
  %v43 = vld [vmem:[%s2 + $0x28] sm:$0xff]
  %v44 = vld [vmem:[%s2 + $0x30] sm:$0xff]
  %v45 = vld [vmem:[%s2 + $0x38] sm:$0xff]
  %v46 = vld [vmem:[%s2 + $0x40] sm:$0xff]
  %v47 = vld [vmem:[%s2 + $0x48] sm:$0xff]
  %v48 = vld [vmem:[%s2 + $0x50] sm:$0xff]
  %v49 = vld [vmem:[%s2 + $0x58] sm:$0xff]
  %v50 = vld [vmem:[%s2 + $0x60] sm:$0xff]
  %v51 = vld [vmem:[%s2 + $0x68] sm:$0xff]
  %v52 = vld [vmem:[%s2 + $0x70] sm:$0xff]
  %v53 = vld [vmem:[%s2 + $0x78] sm:$0xff]
  %v54 = vld [vmem:[%s4] sm:$0xff]
  %v55 = vld [vmem:[%s4 + $0x8] sm:$0xff]
  %v56 = vld [vmem:[%s4 + $0x10] sm:$0xff]
  %v57 = vld [vmem:[%s4 + $0x18] sm:$0xff]
  %v58 = vld [vmem:[%s4 + $0x20] sm:$0xff]
  %v59 = vld [vmem:[%s4 + $0x28] sm:$0xff]
  %v60 = vld [vmem:[%s4 + $0x30] sm:$0xff]
  %v61 = vld [vmem:[%s4 + $0x38] sm:$0xff]
  %v62 = vld [vmem:[%s4 + $0x40] sm:$0xff]
  %v63 = vld [vmem:[%s4 + $0x48] sm:$0xff]
  %v64 = vld [vmem:[%s4 + $0x50] sm:$0xff]
  %v65 = vld [vmem:[%s4 + $0x58] sm:$0xff]
  %v66 = vld [vmem:[%s4 + $0x60] sm:$0xff]
  %v67 = vld [vmem:[%s4 + $0x68] sm:$0xff]
  %v68 = vld [vmem:[%s4 + $0x70] sm:$0xff]
  %v69 = vld [vmem:[%s4 + $0x78] sm:$0xff]
  %v70 = vld [vmem:[%s0] sm:$0xff]
  %v71 = vld [vmem:[%s0 + $0x8] sm:$0xff]
  %72 = vmatprep.subr.mxu0 0.0
  %73 = vmatpush1.msra.mxu0 %v38
  %74 = vmatprep.subr.mxu0 0.0
  %75 = vmatpush1.msra.mxu0 %v39
  %76 = vmatprep.subr.mxu0 0.0
  %77 = vmatpush1.msra.mxu0 %v40
  %78 = vmatprep.subr.mxu0 0.0
  %79 = vmatpush1.msra.mxu0 %v41
  %80 = vmatprep.subr.mxu0 0.0
  %81 = vmatpush1.msra.mxu0 %v42
  %82 = vmatprep.subr.mxu0 0.0
  %83 = vmatpush1.msra.mxu0 %v43
  %84 = vmatprep.subr.mxu0 0.0
  %85 = vmatpush1.msra.mxu0 %v44
  %86 = vmatprep.subr.mxu0 0.0
  %87 = vmatpush1.msra.mxu0 %v45
  %88 = vmatprep.subr.mxu0 0.0
  %89 = vmatpush1.msra.mxu0 %v46
  %90 = vmatprep.subr.mxu0 0.0
  %91 = vmatpush1.msra.mxu0 %v47
  %92 = vmatprep.subr.mxu0 0.0
  %93 = vmatpush1.msra.mxu0 %v48
  %94 = vmatprep.subr.mxu0 0.0
  %95 = vmatpush1.msra.mxu0 %v49
  %96 = vmatprep.subr.mxu0 0.0
  %97 = vmatpush1.msra.mxu0 %v50
  %98 = vmatprep.subr.mxu0 0.0
  %99 = vmatpush1.msra.mxu0 %v51
  %100 = vmatprep.subr.mxu0 0.0
  %101 = vmatpush1.msra.mxu0 %v52
  %102 = vmatprep.subr.mxu0 0.0
  %103 = vmatpush1.msra.mxu0 %v53
  %104 = vmatprep.subr.mxu0 0.0
  %105 = vmatpush1.msra.mxu0 0.0
  %106 = vmatprep.subr.mxu0 0.0
  %107 = vmatpush1.msra.mxu0 0.0
  %108 = vmatprep.subr.mxu0 0.0
  %109 = vmatpush1.msra.mxu0 0.0
  %110 = vmatprep.subr.mxu0 0.0
  %111 = vmatpush1.msra.mxu0 0.0
  %112 = vmatprep.subr.mxu0 0.0
  %113 = vmatpush1.msra.mxu0 0.0
  %114 = vmatprep.subr.mxu0 0.0
  %115 = vmatpush1.msra.mxu0 0.0
  %116 = vmatprep.subr.mxu0 0.0
  %117 = vmatpush1.msra.mxu0 0.0
  %118 = vmatprep.subr.mxu0 0.0
  %119 = vmatpush1.msra.mxu0 0.0
  %120 = vmatprep.subr.mxu0 0.0
  %121 = vmatpush1.msra.mxu0 0.0
  %122 = vmatprep.subr.mxu0 0.0
  %123 = vmatpush1.msra.mxu0 0.0
  %124 = vmatprep.subr.mxu0 0.0
  %125 = vmatpush1.msra.mxu0 0.0
  %126 = vmatprep.subr.mxu0 0.0
  %127 = vmatpush1.msra.mxu0 0.0
  %128 = vmatprep.subr.mxu0 0.0
  %129 = vmatpush1.msra.mxu0 0.0
  %130 = vmatprep.subr.mxu0 0.0
  %131 = vmatpush1.msra.mxu0 0.0
  %132 = vmatprep.subr.mxu0 0.0
  %133 = vmatpush1.msra.mxu0 0.0
  %134 = vmatprep.subr.mxu0 0.0
  %135 = vmatpush1.msra.mxu0 0.0
  %136 = vmatprep.mubr.f32.mxu0 0.0
  %137 = vmatmul.mubr.f32.gmra.mrb[0].mxu0 %v70
  %v138 = vpop.f32.mrb[0].mxu0
  %v139 = vadd.f32 0.0, %v138
  %v140 = vpop.f32.mrb[0].mxu0
  %141 = vmatprep.mubr.f32.mxu0 0.0
  %142 = vmatmul.mubr.f32.gmra.mrb[0].mxu0 %v71
  %v143 = vpop.f32.mrb[0].mxu0
  %v144 = vadd.f32 0.0, %v143
  %v145 = vpop.f32.mrb[0].mxu0
  %146 = vdwg.mxu0
  %147 = vmatprep.subr.mxu0 0.0
  %148 = vmatpush1.msra.mxu0 %v54
  %149 = vmatprep.subr.mxu0 0.0
  %150 = vmatpush1.msra.mxu0 %v55
  %151 = vmatprep.subr.mxu0 0.0
  %152 = vmatpush1.msra.mxu0 %v56
  %153 = vmatprep.subr.mxu0 0.0
  %154 = vmatpush1.msra.mxu0 %v57
  %155 = vmatprep.subr.mxu0 0.0
  %156 = vmatpush1.msra.mxu0 %v58
  %157 = vmatprep.subr.mxu0 0.0
  %158 = vmatpush1.msra.mxu0 %v59
  %159 = vmatprep.subr.mxu0 0.0
  %160 = vmatpush1.msra.mxu0 %v60
  %161 = vmatprep.subr.mxu0 0.0
  %162 = vmatpush1.msra.mxu0 %v61
  %163 = vmatprep.subr.mxu0 0.0
  %164 = vmatpush1.msra.mxu0 %v62
  %165 = vmatprep.subr.mxu0 0.0
  %166 = vmatpush1.msra.mxu0 %v63
  %167 = vmatprep.subr.mxu0 0.0
  %168 = vmatpush1.msra.mxu0 %v64
  %169 = vmatprep.subr.mxu0 0.0
  %170 = vmatpush1.msra.mxu0 %v65
  %171 = vmatprep.subr.mxu0 0.0
  %172 = vmatpush1.msra.mxu0 %v66
  %173 = vmatprep.subr.mxu0 0.0
  %174 = vmatpush1.msra.mxu0 %v67
  %175 = vmatprep.subr.mxu0 0.0
  %176 = vmatpush1.msra.mxu0 %v68
  %177 = vmatprep.subr.mxu0 0.0
  %178 = vmatpush1.msra.mxu0 %v69
  %179 = vmatprep.subr.mxu0 0.0
  %180 = vmatpush1.msra.mxu0 0.0
  %181 = vmatprep.subr.mxu0 0.0
  %182 = vmatpush1.msra.mxu0 0.0
  %183 = vmatprep.subr.mxu0 0.0
  %184 = vmatpush1.msra.mxu0 0.0
  %185 = vmatprep.subr.mxu0 0.0
  %186 = vmatpush1.msra.mxu0 0.0
  %187 = vmatprep.subr.mxu0 0.0
  %188 = vmatpush1.msra.mxu0 0.0
  %189 = vmatprep.subr.mxu0 0.0
  %190 = vmatpush1.msra.mxu0 0.0
  %191 = vmatprep.subr.mxu0 0.0
  %192 = vmatpush1.msra.mxu0 0.0
  %193 = vmatprep.subr.mxu0 0.0
  %194 = vmatpush1.msra.mxu0 0.0
  %195 = vmatprep.subr.mxu0 0.0
  %196 = vmatpush1.msra.mxu0 0.0
  %197 = vmatprep.subr.mxu0 0.0
  %198 = vmatpush1.msra.mxu0 0.0
  %199 = vmatprep.subr.mxu0 0.0
  %200 = vmatpush1.msra.mxu0 0.0
  %201 = vmatprep.subr.mxu0 0.0
  %202 = vmatpush1.msra.mxu0 0.0
  %203 = vmatprep.subr.mxu0 0.0
  %204 = vmatpush1.msra.mxu0 0.0
  %205 = vmatprep.subr.mxu0 0.0
  %206 = vmatpush1.msra.mxu0 0.0
  %207 = vmatprep.subr.mxu0 0.0
  %208 = vmatpush1.msra.mxu0 0.0
  %209 = vmatprep.subr.mxu0 0.0
  %210 = vmatpush1.msra.mxu0 0.0
  %211 = vmatprep.mubr.f32.mxu0 0.0
  %212 = vmatmul.mubr.f32.gmra.mrb[0].mxu0 %v139
  %v213 = vpop.f32.mrb[0].mxu0
  %v214 = vadd.f32 0.0, %v213
  %v215 = vpop.f32.mrb[0].mxu0
  %216 = vmatprep.mubr.f32.mxu0 0.0
  %217 = vmatmul.mubr.f32.gmra.mrb[0].mxu0 %v144
  %v218 = vpop.f32.mrb[0].mxu0
  %v219 = vadd.f32 0.0, %v218
  %v220 = vpop.f32.mrb[0].mxu0
  %221 = vdwg.mxu0
  %v222 = vsel %vm37, 1, 0
  %vm223 = vcmp.eq.s32.totalorder %v222, 1
  %v224 = vsel %vm223, %v214, -1e+30
  %v225 = vsel %vm223, %v219, -1e+30
  %226 = vmax.xlane.f32.xlu0 %v224
  %v227 = vpop.xlane.xlu0 %226
  %228 = vmax.xlane.f32.xlu0 %v225
  %v229 = vpop.xlane.xlu0 %228
  %v230 = vsub.f32 %v224, %v227
  %v231 = vsub.f32 %v225, %v229
  %v232 = vmul.f32 %v230, 1.442695
  %v233 = vpow.pop %v232
  %v234 = vmul.f32 %v231, 1.442695
  %v235 = vpow.pop %v234
  %236 = vadd.xlane.f32.xlu0 %v233
  %v237 = vpop.xlane.xlu0 %236
  %238 = vadd.xlane.f32.xlu0 %v235
  %v239 = vpop.xlane.xlu0 %238
  %v240 = vrcp.pop %v237
  %v241 = vrcp.pop %v239
  %v242 = vmul.f32 %v233, %v240
  %v243 = vmul.f32 %v235, %v241
  %244 = vmatprep.subr.mxu0 0.0
  %245 = vmatpush1.msra.mxu0 %v38
  %246 = vmatprep.subr.mxu0 0.0
  %247 = vmatpush1.msra.mxu0 %v39
  %248 = vmatprep.subr.mxu0 0.0
  %249 = vmatpush1.msra.mxu0 %v40
  %250 = vmatprep.subr.mxu0 0.0
  %251 = vmatpush1.msra.mxu0 %v41
  %252 = vmatprep.subr.mxu0 0.0
  %253 = vmatpush1.msra.mxu0 %v42
  %254 = vmatprep.subr.mxu0 0.0
  %255 = vmatpush1.msra.mxu0 %v43
  %256 = vmatprep.subr.mxu0 0.0
  %257 = vmatpush1.msra.mxu0 %v44
  %258 = vmatprep.subr.mxu0 0.0
  %259 = vmatpush1.msra.mxu0 %v45
  %260 = vmatprep.subr.mxu0 0.0
  %261 = vmatpush1.msra.mxu0 %v46
  %262 = vmatprep.subr.mxu0 0.0
  %263 = vmatpush1.msra.mxu0 %v47
  %264 = vmatprep.subr.mxu0 0.0
  %265 = vmatpush1.msra.mxu0 %v48
  %266 = vmatprep.subr.mxu0 0.0
  %267 = vmatpush1.msra.mxu0 %v49
  %268 = vmatprep.subr.mxu0 0.0
  %269 = vmatpush1.msra.mxu0 %v50
  %270 = vmatprep.subr.mxu0 0.0
  %271 = vmatpush1.msra.mxu0 %v51
  %272 = vmatprep.subr.mxu0 0.0
  %273 = vmatpush1.msra.mxu0 %v52
  %274 = vmatprep.subr.mxu0 0.0
  %275 = vmatpush1.msra.mxu0 %v53
  %276 = vmatprep.subr.mxu0 0.0
  %277 = vmatpush1.msra.mxu0 0.0
  %278 = vmatprep.subr.mxu0 0.0
  %279 = vmatpush1.msra.mxu0 0.0
  %280 = vmatprep.subr.mxu0 0.0
  %281 = vmatpush1.msra.mxu0 0.0
  %282 = vmatprep.subr.mxu0 0.0
  %283 = vmatpush1.msra.mxu0 0.0
  %284 = vmatprep.subr.mxu0 0.0
  %285 = vmatpush1.msra.mxu0 0.0
  %286 = vmatprep.subr.mxu0 0.0
  %287 = vmatpush1.msra.mxu0 0.0
  %288 = vmatprep.subr.mxu0 0.0
  %289 = vmatpush1.msra.mxu0 0.0
  %290 = vmatprep.subr.mxu0 0.0
  %291 = vmatpush1.msra.mxu0 0.0
  %292 = vmatprep.subr.mxu0 0.0
  %293 = vmatpush1.msra.mxu0 0.0
  %294 = vmatprep.subr.mxu0 0.0
  %295 = vmatpush1.msra.mxu0 0.0
  %296 = vmatprep.subr.mxu0 0.0
  %297 = vmatpush1.msra.mxu0 0.0
  %298 = vmatprep.subr.mxu0 0.0
  %299 = vmatpush1.msra.mxu0 0.0
  %300 = vmatprep.subr.mxu0 0.0
  %301 = vmatpush1.msra.mxu0 0.0
  %302 = vmatprep.subr.mxu0 0.0
  %303 = vmatpush1.msra.mxu0 0.0
  %304 = vmatprep.subr.mxu0 0.0
  %305 = vmatpush1.msra.mxu0 0.0
  %306 = vmatprep.subr.mxu0 0.0
  %307 = vmatpush1.msra.mxu0 0.0
  %308 = vmatprep.mubr.f32.mxu0 0.0
  %309 = vmatmul.mubr.f32.gmra.mrb[0].mxu0 %v242
  %v310 = vpop.f32.mrb[0].mxu0
  %v311 = vadd.f32 0.0, %v310
  %v312 = vpop.f32.mrb[0].mxu0
  %313 = vmatprep.mubr.f32.mxu0 0.0
  %314 = vmatmul.mubr.f32.gmra.mrb[0].mxu0 %v243
  %v315 = vpop.f32.mrb[0].mxu0
  %v316 = vadd.f32 0.0, %v315
  %v317 = vpop.f32.mrb[0].mxu0
  %318 = vdwg.mxu0
  %319 = vmatprep.subr.mxu0 0.0
  %320 = vmatpush1.msra.mxu0 %v54
  %321 = vmatprep.subr.mxu0 0.0
  %322 = vmatpush1.msra.mxu0 %v55
  %323 = vmatprep.subr.mxu0 0.0
  %324 = vmatpush1.msra.mxu0 %v56
  %325 = vmatprep.subr.mxu0 0.0
  %326 = vmatpush1.msra.mxu0 %v57
  %327 = vmatprep.subr.mxu0 0.0
  %328 = vmatpush1.msra.mxu0 %v58
  %329 = vmatprep.subr.mxu0 0.0
  %330 = vmatpush1.msra.mxu0 %v59
  %331 = vmatprep.subr.mxu0 0.0
  %332 = vmatpush1.msra.mxu0 %v60
  %333 = vmatprep.subr.mxu0 0.0
  %334 = vmatpush1.msra.mxu0 %v61
  %335 = vmatprep.subr.mxu0 0.0
  %336 = vmatpush1.msra.mxu0 %v62
  %337 = vmatprep.subr.mxu0 0.0
  %338 = vmatpush1.msra.mxu0 %v63
  %339 = vmatprep.subr.mxu0 0.0
  %340 = vmatpush1.msra.mxu0 %v64
  %341 = vmatprep.subr.mxu0 0.0
  %342 = vmatpush1.msra.mxu0 %v65
  %343 = vmatprep.subr.mxu0 0.0
  %344 = vmatpush1.msra.mxu0 %v66
  %345 = vmatprep.subr.mxu0 0.0
  %346 = vmatpush1.msra.mxu0 %v67
  %347 = vmatprep.subr.mxu0 0.0
  %348 = vmatpush1.msra.mxu0 %v68
  %349 = vmatprep.subr.mxu0 0.0
  %350 = vmatpush1.msra.mxu0 %v69
  %351 = vmatprep.subr.mxu0 0.0
  %352 = vmatpush1.msra.mxu0 0.0
  %353 = vmatprep.subr.mxu0 0.0
  %354 = vmatpush1.msra.mxu0 0.0
  %355 = vmatprep.subr.mxu0 0.0
  %356 = vmatpush1.msra.mxu0 0.0
  %357 = vmatprep.subr.mxu0 0.0
  %358 = vmatpush1.msra.mxu0 0.0
  %359 = vmatprep.subr.mxu0 0.0
  %360 = vmatpush1.msra.mxu0 0.0
  %361 = vmatprep.subr.mxu0 0.0
  %362 = vmatpush1.msra.mxu0 0.0
  %363 = vmatprep.subr.mxu0 0.0
  %364 = vmatpush1.msra.mxu0 0.0
  %365 = vmatprep.subr.mxu0 0.0
  %366 = vmatpush1.msra.mxu0 0.0
  %367 = vmatprep.subr.mxu0 0.0
  %368 = vmatpush1.msra.mxu0 0.0
  %369 = vmatprep.subr.mxu0 0.0
  %370 = vmatpush1.msra.mxu0 0.0
  %371 = vmatprep.subr.mxu0 0.0
  %372 = vmatpush1.msra.mxu0 0.0
  %373 = vmatprep.subr.mxu0 0.0
  %374 = vmatpush1.msra.mxu0 0.0
  %375 = vmatprep.subr.mxu0 0.0
  %376 = vmatpush1.msra.mxu0 0.0
  %377 = vmatprep.subr.mxu0 0.0
  %378 = vmatpush1.msra.mxu0 0.0
  %379 = vmatprep.subr.mxu0 0.0
  %380 = vmatpush1.msra.mxu0 0.0
  %381 = vmatprep.subr.mxu0 0.0
  %382 = vmatpush1.msra.mxu0 0.0
  %383 = vmatprep.mubr.f32.mxu0 0.0
  %384 = vmatmul.mubr.f32.gmra.mrb[0].mxu0 %v311
  %v385 = vpop.f32.mrb[0].mxu0
  %v386 = vadd.f32 0.0, %v385
  %v387 = vpop.f32.mrb[0].mxu0
  %388 = vmatprep.mubr.f32.mxu0 0.0
  %389 = vmatmul.mubr.f32.gmra.mrb[0].mxu0 %v316
  %v390 = vpop.f32.mrb[0].mxu0
  %v391 = vadd.f32 0.0, %v390
  %v392 = vpop.f32.mrb[0].mxu0
  %393 = vdwg.mxu0
  %v394 = vsel %vm223, %v386, -1e+30
  %v395 = vsel %vm223, %v391, -1e+30
  %396 = vmax.xlane.f32.xlu0 %v394
  %v397 = vpop.xlane.xlu0 %396
  %398 = vmax.xlane.f32.xlu0 %v395
  %v399 = vpop.xlane.xlu0 %398
  %v400 = vsub.f32 %v394, %v397
  %v401 = vsub.f32 %v395, %v399
  %v402 = vmul.f32 %v400, 1.442695
  %v403 = vpow.pop %v402
  %v404 = vmul.f32 %v401, 1.442695
  %v405 = vpow.pop %v404
  %406 = vadd.xlane.f32.xlu0 %v403
  %v407 = vpop.xlane.xlu0 %406
  %408 = vadd.xlane.f32.xlu0 %v405
  %v409 = vpop.xlane.xlu0 %408
  %v410 = vrcp.pop %v407
  %v411 = vrcp.pop %v409
  %v412 = vmul.f32 %v403, %v410
  %v413 = vmul.f32 %v405, %v411
  %v414 = vld [vmem:[%s6] sm:$0xff]
  %v415 = vld [vmem:[%s6 + $0x8] sm:$0xff]
  %v416 = vld [vmem:[%s6 + $0x10] sm:$0xff]
  %v417 = vld [vmem:[%s6 + $0x18] sm:$0xff]
  %v418 = vld [vmem:[%s6 + $0x20] sm:$0xff]
  %v419 = vld [vmem:[%s6 + $0x28] sm:$0xff]
  %v420 = vld [vmem:[%s6 + $0x30] sm:$0xff]
  %v421 = vld [vmem:[%s6 + $0x38] sm:$0xff]
  %v422 = vld [vmem:[%s6 + $0x40] sm:$0xff]
  %v423 = vld [vmem:[%s6 + $0x48] sm:$0xff]
  %v424 = vld [vmem:[%s6 + $0x50] sm:$0xff]
  %v425 = vld [vmem:[%s6 + $0x58] sm:$0xff]
  %v426 = vld [vmem:[%s6 + $0x60] sm:$0xff]
  %v427 = vld [vmem:[%s6 + $0x68] sm:$0xff]
  %v428 = vld [vmem:[%s6 + $0x70] sm:$0xff]
  %v429 = vld [vmem:[%s6 + $0x78] sm:$0xff]
  %v430 = vld [vmem:[%s7] sm:$0x1]
  %v432 = vlaneseq
  %v433 = vshrl.u32 %v432, 7
  %v434 = vsub.s32 0, %v433
  %v435 = vrot.slane %v430, %v434
  %437 = vmatprep.subr.mxu0 0.0
  %438 = vmatpush1.msra.mxu0 %v414
  %439 = vmatprep.subr.mxu0 0.0
  %440 = vmatpush1.msra.mxu0 %v415
  %441 = vmatprep.subr.mxu0 0.0
  %442 = vmatpush1.msra.mxu0 %v416
  %443 = vmatprep.subr.mxu0 0.0
  %444 = vmatpush1.msra.mxu0 %v417
  %445 = vmatprep.subr.mxu0 0.0
  %446 = vmatpush1.msra.mxu0 %v418
  %447 = vmatprep.subr.mxu0 0.0
  %448 = vmatpush1.msra.mxu0 %v419
  %449 = vmatprep.subr.mxu0 0.0
  %450 = vmatpush1.msra.mxu0 %v420
  %451 = vmatprep.subr.mxu0 0.0
  %452 = vmatpush1.msra.mxu0 %v421
  %453 = vmatprep.subr.mxu0 0.0
  %454 = vmatpush1.msra.mxu0 %v422
  %455 = vmatprep.subr.mxu0 0.0
  %456 = vmatpush1.msra.mxu0 %v423
  %457 = vmatprep.subr.mxu0 0.0
  %458 = vmatpush1.msra.mxu0 %v424
  %459 = vmatprep.subr.mxu0 0.0
  %460 = vmatpush1.msra.mxu0 %v425
  %461 = vmatprep.subr.mxu0 0.0
  %462 = vmatpush1.msra.mxu0 %v426
  %463 = vmatprep.subr.mxu0 0.0
  %464 = vmatpush1.msra.mxu0 %v427
  %465 = vmatprep.subr.mxu0 0.0
  %466 = vmatpush1.msra.mxu0 %v428
  %467 = vmatprep.subr.mxu0 0.0
  %468 = vmatpush1.msra.mxu0 %v429
  %469 = vmatprep.subr.mxu0 0.0
  %470 = vmatpush1.msra.mxu0 0.0
  %471 = vmatprep.subr.mxu0 0.0
  %472 = vmatpush1.msra.mxu0 0.0
  %473 = vmatprep.subr.mxu0 0.0
  %474 = vmatpush1.msra.mxu0 0.0
  %475 = vmatprep.subr.mxu0 0.0
  %476 = vmatpush1.msra.mxu0 0.0
  %477 = vmatprep.subr.mxu0 0.0
  %478 = vmatpush1.msra.mxu0 0.0
  %479 = vmatprep.subr.mxu0 0.0
  %480 = vmatpush1.msra.mxu0 0.0
  %481 = vmatprep.subr.mxu0 0.0
  %482 = vmatpush1.msra.mxu0 0.0
  %483 = vmatprep.subr.mxu0 0.0
  %484 = vmatpush1.msra.mxu0 0.0
  %485 = vmatprep.subr.mxu0 0.0
  %486 = vmatpush1.msra.mxu0 0.0
  %487 = vmatprep.subr.mxu0 0.0
  %488 = vmatpush1.msra.mxu0 0.0
  %489 = vmatprep.subr.mxu0 0.0
  %490 = vmatpush1.msra.mxu0 0.0
  %491 = vmatprep.subr.mxu0 0.0
  %492 = vmatpush1.msra.mxu0 0.0
  %493 = vmatprep.subr.mxu0 0.0
  %494 = vmatpush1.msra.mxu0 0.0
  %495 = vmatprep.subr.mxu0 0.0
  %496 = vmatpush1.msra.mxu0 0.0
  %497 = vmatprep.subr.mxu0 0.0
  %498 = vmatpush1.msra.mxu0 0.0
  %499 = vmatprep.subr.mxu0 0.0
  %500 = vmatpush1.msra.mxu0 0.0
  %501 = vmatprep.mubr.f32.mxu0 0.0
  %502 = vmatmul.mubr.f32.gmra.mrb[0].mxu0 %v412
  %v503 = vpop.f32.mrb[0].mxu0
  %v504 = vadd.f32 %v435, %v503
  %v505 = vpop.f32.mrb[0].mxu0
  %506 = vmatprep.mubr.f32.mxu0 0.0
  %507 = vmatmul.mubr.f32.gmra.mrb[0].mxu0 %v413
  %v508 = vpop.f32.mrb[0].mxu0
  %v509 = vadd.f32 %v435, %v508
  %v510 = vpop.f32.mrb[0].mxu0
  %511 = vdwg.mxu0
  %v512 = vld [vmem:[%s8] sm:$0xff]
  %v513 = vld [vmem:[%s8 + $0x8] sm:$0xff]
  %v514 = vld [vmem:[%s8 + $0x10] sm:$0xff]
  %v515 = vld [vmem:[%s8 + $0x18] sm:$0xff]
  %v516 = vld [vmem:[%s8 + $0x20] sm:$0xff]
  %v517 = vld [vmem:[%s8 + $0x28] sm:$0xff]
  %v518 = vld [vmem:[%s8 + $0x30] sm:$0xff]
  %v519 = vld [vmem:[%s8 + $0x38] sm:$0xff]
  %v520 = vld [vmem:[%s8 + $0x40] sm:$0xff]
  %v521 = vld [vmem:[%s8 + $0x48] sm:$0xff]
  %v522 = vld [vmem:[%s8 + $0x50] sm:$0xff]
  %v523 = vld [vmem:[%s8 + $0x58] sm:$0xff]
  %v524 = vld [vmem:[%s8 + $0x60] sm:$0xff]
  %v525 = vld [vmem:[%s8 + $0x68] sm:$0xff]
  %v526 = vld [vmem:[%s8 + $0x70] sm:$0xff]
  %v527 = vld [vmem:[%s8 + $0x78] sm:$0xff]
  %v528 = vld [vmem:[%s9] sm:$0x1]
  %v530 = vlaneseq
  %v531 = vshrl.u32 %v530, 7
  %v532 = vsub.s32 0, %v531
  %v533 = vrot.slane %v528, %v532
  %535 = vmatprep.subr.mxu0 0.0
  %536 = vmatpush1.msra.mxu0 %v512
  %537 = vmatprep.subr.mxu0 0.0
  %538 = vmatpush1.msra.mxu0 %v513
  %539 = vmatprep.subr.mxu0 0.0
  %540 = vmatpush1.msra.mxu0 %v514
  %541 = vmatprep.subr.mxu0 0.0
  %542 = vmatpush1.msra.mxu0 %v515
  %543 = vmatprep.subr.mxu0 0.0
  %544 = vmatpush1.msra.mxu0 %v516
  %545 = vmatprep.subr.mxu0 0.0
  %546 = vmatpush1.msra.mxu0 %v517
  %547 = vmatprep.subr.mxu0 0.0
  %548 = vmatpush1.msra.mxu0 %v518
  %549 = vmatprep.subr.mxu0 0.0
  %550 = vmatpush1.msra.mxu0 %v519
  %551 = vmatprep.subr.mxu0 0.0
  %552 = vmatpush1.msra.mxu0 %v520
  %553 = vmatprep.subr.mxu0 0.0
  %554 = vmatpush1.msra.mxu0 %v521
  %555 = vmatprep.subr.mxu0 0.0
  %556 = vmatpush1.msra.mxu0 %v522
  %557 = vmatprep.subr.mxu0 0.0
  %558 = vmatpush1.msra.mxu0 %v523
  %559 = vmatprep.subr.mxu0 0.0
  %560 = vmatpush1.msra.mxu0 %v524
  %561 = vmatprep.subr.mxu0 0.0
  %562 = vmatpush1.msra.mxu0 %v525
  %563 = vmatprep.subr.mxu0 0.0
  %564 = vmatpush1.msra.mxu0 %v526
  %565 = vmatprep.subr.mxu0 0.0
  %566 = vmatpush1.msra.mxu0 %v527
  %567 = vmatprep.subr.mxu0 0.0
  %568 = vmatpush1.msra.mxu0 0.0
  %569 = vmatprep.subr.mxu0 0.0
  %570 = vmatpush1.msra.mxu0 0.0
  %571 = vmatprep.subr.mxu0 0.0
  %572 = vmatpush1.msra.mxu0 0.0
  %573 = vmatprep.subr.mxu0 0.0
  %574 = vmatpush1.msra.mxu0 0.0
  %575 = vmatprep.subr.mxu0 0.0
  %576 = vmatpush1.msra.mxu0 0.0
  %577 = vmatprep.subr.mxu0 0.0
  %578 = vmatpush1.msra.mxu0 0.0
  %579 = vmatprep.subr.mxu0 0.0
  %580 = vmatpush1.msra.mxu0 0.0
  %581 = vmatprep.subr.mxu0 0.0
  %582 = vmatpush1.msra.mxu0 0.0
  %583 = vmatprep.subr.mxu0 0.0
  %584 = vmatpush1.msra.mxu0 0.0
  %585 = vmatprep.subr.mxu0 0.0
  %586 = vmatpush1.msra.mxu0 0.0
  %587 = vmatprep.subr.mxu0 0.0
  %588 = vmatpush1.msra.mxu0 0.0
  %589 = vmatprep.subr.mxu0 0.0
  %590 = vmatpush1.msra.mxu0 0.0
  %591 = vmatprep.subr.mxu0 0.0
  %592 = vmatpush1.msra.mxu0 0.0
  %593 = vmatprep.subr.mxu0 0.0
  %594 = vmatpush1.msra.mxu0 0.0
  %595 = vmatprep.subr.mxu0 0.0
  %596 = vmatpush1.msra.mxu0 0.0
  %597 = vmatprep.subr.mxu0 0.0
  %598 = vmatpush1.msra.mxu0 0.0
  %599 = vmatprep.mubr.f32.mxu0 0.0
  %600 = vmatmul.mubr.f32.gmra.mrb[0].mxu0 %v504
  %v601 = vpop.f32.mrb[0].mxu0
  %v602 = vadd.f32 %v533, %v601
  %v603 = vpop.f32.mrb[0].mxu0
  %604 = vmatprep.mubr.f32.mxu0 0.0
  %605 = vmatmul.mubr.f32.gmra.mrb[0].mxu0 %v509
  %v606 = vpop.f32.mrb[0].mxu0
  %v607 = vadd.f32 %v533, %v606
  %v608 = vpop.f32.mrb[0].mxu0
  %609 = vdwg.mxu0
  %610 = vst [vmem:[%s10] sm:$0xff] %v602
  %611 = vst [vmem:[%s10 + $0x8] sm:$0xff] %v607
  // Predicated region
  $region42: #{nar_forward.1} parent=0 // pred_check
    _
  $region43: #{nar_forward.1} parent=0 // pred_check_branch
    %613 = sbr.rel (0) target = $region45
  $region44: #{nar_forward.1} parent=0 // pred_region
    _
  $region45: #{nar_forward.1} parent=0 // pred_fallthru
    _
  // Predicated region
  $region46: #{nar_forward.1} parent=0 // pred_check
    _
  $region47: #{nar_forward.1} parent=0 // pred_check_branch
    %615 = sbr.rel (0) target = $region49
  $region48: #{nar_forward.1} parent=0 // pred_region
    _
  $region49: #{nar_forward.1} parent=0 // pred_fallthru
    _

</llo_original>
